<compile_context>
chip_gen: v6e
topology: v6e:2x2x1
jax: 0.10.0
libtpu: 0.0.40
codegen_flags: <defaults>
</compile_context>

<pallas_src>
import functools

import jax
import jax.numpy as jnp
from jax.experimental import pallas as pl
from jax.experimental.pallas import tpu as pltpu


def _npairs_loss_kernel(x_ref, out_ref, *, cluster_size, num_clusters):
    """Whole N-pairs contrastive loss for one (N, D) slab.

    x_ref:   (N, D) float32 in VMEM, N = num_clusters * cluster_size.
    out_ref: (1, 1) float32 in SMEM.
    """
    S = cluster_size
    C = num_clusters
    N = C * S
    x = x_ref[...]                                            # (N, D)

    # Contract the feature dim of both operands -> A @ B.T without a transpose.
    dn = (((1,), (1,)), ((), ()))

    def cluster_ids(shape, dim):
        # floor(idx / S) without vector integer division: sum of compares.
        idx = jax.lax.broadcasted_iota(jnp.int32, shape, dim)
        cid = jnp.zeros(shape, jnp.int32)
        for k in range(1, C):                                 # static unroll
            cid = cid + (idx >= k * S).astype(jnp.int32)
        return cid

    # 1-D cluster-id vectors (single-vreg work), block-diag mask by broadcast.
    row_cid = cluster_ids((N, 1), 0)                          # (N, 1) sublane
    col_cid = cluster_ids((1, N), 1)                          # (1, N) lane
    same = row_cid == col_cid                                 # (N, N) bool

    # ---------------- positives: one fused N x N Gram ----------------------
    gram = jax.lax.dot_general(x, x, dn,
                               preferred_element_type=jnp.float32)  # (N, N)

    # Per-row squared norms (one lane reduce over D), then per-column cluster
    # total squared norm via one masked sublane reduce:
    #   len_col[j] = sum_{i in cluster(j)} ||x_i||^2
    # For same-cluster pairs this equals the reference per-cluster `length`.
    rowsq = jnp.sum(x * x, axis=-1, keepdims=True)            # (N, 1)
    rowsq_b = jnp.broadcast_to(rowsq, (N, N))                 # (N, N)
    len_col = jnp.sum(jnp.where(same, rowsq_b, 0.0),
                      axis=0, keepdims=True)                  # (1, N)
    inv_len = 1.0 / len_col                                   # exact divide

    # One exp pass; off-block entries get exp(-inf) == 0.  (Do NOT switch to
    # mask * exp(...): large off-block logits could give inf * 0 = NaN.)
    arg = jnp.where(same, gram * inv_len, -jnp.inf)
    pos = jnp.sum(jnp.exp(arg))

    # ------------- negatives: centroid Gram from the same Gram -------------
    # 0/1 membership matrix sel0 (C, N); centroid Gram = (1/S^2) sel0 G sel0^T.
    krow = jax.lax.broadcasted_iota(jnp.int32, (C, 1), 0)     # (C, 1)
    sel0 = (krow == col_cid).astype(jnp.float32)              # (C, N)
    m = jnp.dot(sel0, gram, preferred_element_type=jnp.float32)      # (C, N)
    gram_c = jax.lax.dot_general(m, sel0, dn,
                                 preferred_element_type=jnp.float32)  # (C, C)
    gram_c = gram_c * jnp.float32(1.0 / (S * S))

    # Reference `length` for negatives = sum_k ||centroid_k||^2 = trace(gram_c).
    ci = jax.lax.broadcasted_iota(jnp.int32, (C, C), 0)
    cj = jax.lax.broadcasted_iota(jnp.int32, (C, C), 1)
    len_c = jnp.sum(jnp.where(ci == cj, gram_c, 0.0))         # scalar
    neg = jnp.sum(jnp.exp(gram_c / len_c))

    out_ref[0, 0] = -jnp.log(pos / (pos + neg))


def contrastive_loss_npairs(x, cluster_size):
    """x: (5*cluster_size, 1, D) array.  Returns a scalar float32 loss."""
    num_clusters = 5
    n, one, d = x.shape
    assert one == 1 and n == num_clusters * cluster_size

    x2 = x.reshape(n, d).astype(jnp.float32)

    kernel = functools.partial(
        _npairs_loss_kernel,
        cluster_size=cluster_size,
        num_clusters=num_clusters,
    )

    out = pl.pallas_call(
        kernel,
        out_shape=jax.ShapeDtypeStruct((1, 1), jnp.float32),
        in_specs=[pl.BlockSpec(memory_space=pltpu.MemorySpace.VMEM)],
        out_specs=pl.BlockSpec(memory_space=pltpu.MemorySpace.SMEM),
    )(x2)
    return out[0, 0]


def _reference_loss(x, cluster_size):
    """Pure-JAX reference mirroring the PyTorch forward exactly."""
    x = x.reshape(x.shape[0], x.shape[2]).astype(jnp.float32)
    pos = 0.0
    cents = []
    for idx in range(5):
        c = x[idx * cluster_size:(idx + 1) * cluster_size]
        scalar = c @ c.T
        li = jnp.sqrt(jnp.sum(c ** 2, axis=-1))
        length = li @ li[:, None]          # shape (1,), scalar value
        pos = pos + jnp.sum(jnp.exp(scalar / length))
        cents.append(c.mean(axis=0))
    cents = jnp.stack(cents)
    scalar = cents @ cents.T
    ci = jnp.sqrt(jnp.sum(cents ** 2, axis=-1))
    length = ci @ ci[:, None]
    neg = jnp.sum(jnp.exp(scalar / length))
    return -jnp.log(pos / (pos + neg))


if __name__ == "__main__":
    cluster_size = 8
    d = 32
    key = jax.random.PRNGKey(0)
    x = jax.random.normal(key, (5 * cluster_size, 1, d), dtype=jnp.float32)

    loss = contrastive_loss_npairs(x, cluster_size)
    jax.block_until_ready(loss)

    ref = _reference_loss(x, cluster_size)
    assert jnp.isfinite(loss), "loss is not finite"
    assert jnp.allclose(loss, ref, rtol=1e-3, atol=1e-3), (loss, ref)

    print("KERNEL_OK")
</pallas_src>

<mosaic_0001>
module attributes {stable_mosaic.version = 11 : i64} {
  func.func @_npairs_loss_kernel(%arg0: memref<40x32xf32, #tpu.memory_space<vmem>>, %arg1: memref<1x1xf32, #tpu.memory_space<smem>>) attributes {dimension_semantics = [], scalar_prefetch = 0 : i64, scratch_operands = 0 : i64, tpu.core_type = #tpu.core_type<tc>} {
    %c0 = arith.constant 0 : index
    %c0_0 = arith.constant 0 : index
    %0 = vector.load %arg0[%c0, %c0_0] : memref<40x32xf32, #tpu.memory_space<vmem>>, vector<40x32xf32>
    %1 = tpu.iota {dimensions = array<i32: 0>} : vector<40x1xi32>
    %c0_i32 = arith.constant 0 : i32
    %2 = vector.broadcast %c0_i32 : i32 to vector<40x1xi32>
    %c8_i32 = arith.constant 8 : i32
    %3 = vector.broadcast %c8_i32 : i32 to vector<40x1xi32>
    %4 = arith.cmpi sge, %1, %3 : vector<40x1xi32>
    %5 = arith.extui %4 : vector<40x1xi1> to vector<40x1xi32>
    %6 = arith.addi %2, %5 : vector<40x1xi32>
    %c16_i32 = arith.constant 16 : i32
    %7 = vector.broadcast %c16_i32 : i32 to vector<40x1xi32>
    %8 = arith.cmpi sge, %1, %7 : vector<40x1xi32>
    %9 = arith.extui %8 : vector<40x1xi1> to vector<40x1xi32>
    %10 = arith.addi %6, %9 : vector<40x1xi32>
    %c24_i32 = arith.constant 24 : i32
    %11 = vector.broadcast %c24_i32 : i32 to vector<40x1xi32>
    %12 = arith.cmpi sge, %1, %11 : vector<40x1xi32>
    %13 = arith.extui %12 : vector<40x1xi1> to vector<40x1xi32>
    %14 = arith.addi %10, %13 : vector<40x1xi32>
    %c32_i32 = arith.constant 32 : i32
    %15 = vector.broadcast %c32_i32 : i32 to vector<40x1xi32>
    %16 = arith.cmpi sge, %1, %15 : vector<40x1xi32>
    %17 = arith.extui %16 : vector<40x1xi1> to vector<40x1xi32>
    %18 = arith.addi %14, %17 : vector<40x1xi32>
    %19 = tpu.iota {dimensions = array<i32: 1>} : vector<1x40xi32>
    %c0_i32_1 = arith.constant 0 : i32
    %20 = vector.broadcast %c0_i32_1 : i32 to vector<1x40xi32>
    %c8_i32_2 = arith.constant 8 : i32
    %21 = vector.broadcast %c8_i32_2 : i32 to vector<1x40xi32>
    %22 = arith.cmpi sge, %19, %21 : vector<1x40xi32>
    %23 = arith.extui %22 : vector<1x40xi1> to vector<1x40xi32>
    %24 = arith.addi %20, %23 : vector<1x40xi32>
    %c16_i32_3 = arith.constant 16 : i32
    %25 = vector.broadcast %c16_i32_3 : i32 to vector<1x40xi32>
    %26 = arith.cmpi sge, %19, %25 : vector<1x40xi32>
    %27 = arith.extui %26 : vector<1x40xi1> to vector<1x40xi32>
    %28 = arith.addi %24, %27 : vector<1x40xi32>
    %c24_i32_4 = arith.constant 24 : i32
    %29 = vector.broadcast %c24_i32_4 : i32 to vector<1x40xi32>
    %30 = arith.cmpi sge, %19, %29 : vector<1x40xi32>
    %31 = arith.extui %30 : vector<1x40xi1> to vector<1x40xi32>
    %32 = arith.addi %28, %31 : vector<1x40xi32>
    %c32_i32_5 = arith.constant 32 : i32
    %33 = vector.broadcast %c32_i32_5 : i32 to vector<1x40xi32>
    %34 = arith.cmpi sge, %19, %33 : vector<1x40xi32>
    %35 = arith.extui %34 : vector<1x40xi1> to vector<1x40xi32>
    %36 = arith.addi %32, %35 : vector<1x40xi32>
    %37 = vector.broadcast %18 : vector<40x1xi32> to vector<40x40xi32>
    %38 = vector.broadcast %36 : vector<1x40xi32> to vector<40x40xi32>
    %39 = arith.cmpi eq, %37, %38 : vector<40x40xi32>
    %cst = arith.constant dense<0.000000e+00> : vector<40x40xf32>
    %40 = tpu.matmul %0, %0, %cst {dimension_numbers = #tpu.dot_dimension_numbers<[1], [1], [0], [0], [0, 0, 1, 0], [], []>} : vector<40x32xf32>, vector<40x32xf32>, vector<40x40xf32> -> vector<40x40xf32>
    %41 = arith.mulf %0, %0 : vector<40x32xf32>
    %cst_6 = arith.constant dense<0.000000e+00> : vector<40xf32>
    %42 = vector.multi_reduction <add>, %41, %cst_6 [1] : vector<40x32xf32> to vector<40xf32>
    %43 = vector.shape_cast %42 : vector<40xf32> to vector<40x1xf32>
    %44 = vector.shape_cast %43 : vector<40x1xf32> to vector<40x1xf32>
    %45 = vector.broadcast %44 : vector<40x1xf32> to vector<40x40xf32>
    %cst_7 = arith.constant 0.000000e+00 : f32
    %46 = vector.broadcast %cst_7 : f32 to vector<40x40xf32>
    %47 = arith.select %39, %45, %46 : vector<40x40xi1>, vector<40x40xf32>
    %cst_8 = arith.constant dense<0.000000e+00> : vector<40xf32>
    %48 = vector.multi_reduction <add>, %47, %cst_8 [0] : vector<40x40xf32> to vector<40xf32>
    %49 = vector.shape_cast %48 : vector<40xf32> to vector<1x40xf32>
    %cst_9 = arith.constant 1.000000e+00 : f32
    %50 = vector.broadcast %cst_9 : f32 to vector<1x40xf32>
    %51 = arith.divf %50, %49 : vector<1x40xf32>
    %52 = vector.broadcast %51 : vector<1x40xf32> to vector<40x40xf32>
    %53 = arith.mulf %40, %52 : vector<40x40xf32>
    %cst_10 = arith.constant 0xFF800000 : f32
    %54 = vector.broadcast %cst_10 : f32 to vector<40x40xf32>
    %55 = arith.select %39, %53, %54 : vector<40x40xi1>, vector<40x40xf32>
    %56 = math.exp %55 : vector<40x40xf32>
    %57 = vector.shape_cast %56 : vector<40x40xf32> to vector<1x40x40xf32>
    %cst_11 = arith.constant dense<0.000000e+00> : vector<1xf32>
    %58 = vector.multi_reduction <add>, %57, %cst_11 [1, 2] : vector<1x40x40xf32> to vector<1xf32>
    %59 = vector.shape_cast %58 : vector<1xf32> to vector<1x1x1xf32>
    %60 = vector.extract %59[0, 0, 0] : f32 from vector<1x1x1xf32>
    %61 = tpu.iota {dimensions = array<i32: 0>} : vector<5x1xi32>
    %62 = vector.broadcast %61 : vector<5x1xi32> to vector<5x40xi32>
    %63 = vector.broadcast %36 : vector<1x40xi32> to vector<5x40xi32>
    %64 = arith.cmpi eq, %62, %63 : vector<5x40xi32>
    %65 = arith.extui %64 : vector<5x40xi1> to vector<5x40xi32>
    %66 = arith.sitofp %65 : vector<5x40xi32> to vector<5x40xf32>
    %cst_12 = arith.constant dense<0.000000e+00> : vector<5x40xf32>
    %67 = tpu.matmul %66, %40, %cst_12 {dimension_numbers = #tpu.dot_dimension_numbers<[1], [0], [0], [1], [0, 0, 1, 1], [], []>} : vector<5x40xf32>, vector<40x40xf32>, vector<5x40xf32> -> vector<5x40xf32>
    %cst_13 = arith.constant dense<0.000000e+00> : vector<5x5xf32>
    %68 = tpu.matmul %67, %66, %cst_13 {dimension_numbers = #tpu.dot_dimension_numbers<[1], [1], [0], [0], [0, 0, 1, 0], [], []>} : vector<5x40xf32>, vector<5x40xf32>, vector<5x5xf32> -> vector<5x5xf32>
    %cst_14 = arith.constant 1.562500e-02 : f32
    %69 = vector.broadcast %cst_14 : f32 to vector<5x5xf32>
    %70 = arith.mulf %68, %69 : vector<5x5xf32>
    %71 = tpu.iota {dimensions = array<i32: 0>} : vector<5x5xi32>
    %72 = tpu.iota {dimensions = array<i32: 1>} : vector<5x5xi32>
    %73 = arith.cmpi eq, %71, %72 : vector<5x5xi32>
    %cst_15 = arith.constant 0.000000e+00 : f32
    %74 = vector.broadcast %cst_15 : f32 to vector<5x5xf32>
    %75 = arith.select %73, %70, %74 : vector<5x5xi1>, vector<5x5xf32>
    %76 = vector.shape_cast %75 : vector<5x5xf32> to vector<1x5x5xf32>
    %cst_16 = arith.constant dense<0.000000e+00> : vector<1xf32>
    %77 = vector.multi_reduction <add>, %76, %cst_16 [1, 2] : vector<1x5x5xf32> to vector<1xf32>
    %78 = vector.shape_cast %77 : vector<1xf32> to vector<1x1x1xf32>
    %79 = vector.extract %78[0, 0, 0] : f32 from vector<1x1x1xf32>
    %80 = vector.broadcast %79 : f32 to vector<5x5xf32>
    %81 = arith.divf %70, %80 : vector<5x5xf32>
    %82 = math.exp %81 : vector<5x5xf32>
    %83 = vector.shape_cast %82 : vector<5x5xf32> to vector<1x5x5xf32>
    %cst_17 = arith.constant dense<0.000000e+00> : vector<1xf32>
    %84 = vector.multi_reduction <add>, %83, %cst_17 [1, 2] : vector<1x5x5xf32> to vector<1xf32>
    %85 = vector.shape_cast %84 : vector<1xf32> to vector<1x1x1xf32>
    %86 = vector.extract %85[0, 0, 0] : f32 from vector<1x1x1xf32>
    %87 = arith.addf %60, %86 : f32
    %88 = arith.divf %60, %87 : f32
    %89 = math.log %88 : f32
    %cst_18 = arith.constant 0.000000e+00 : f32
    %90 = arith.subf %cst_18, %89 : f32
    %c0_19 = arith.constant 0 : index
    %c0_20 = arith.constant 0 : index
    %91 = memref.load %arg1[%c0_19, %c0_20] : memref<1x1xf32, #tpu.memory_space<smem>>
    memref.store %90, %arg1[%c0_19, %c0_20] : memref<1x1xf32, #tpu.memory_space<smem>>
    return
  }
}

</mosaic_0001>

<llo_original>
// kernel: tpu_custom_call.1
$region0: #{tpu_custom_call.1}
  #allocation0 [shape = 'u32[]', space=smem, size = 0x4, offset = 0x4, fixed_abs, tag = 'smem constant byte address 0x4 - core index']
  #allocation1 [shape = 'u32[144,128]{1,0:T(1,128)}', space=vmem, size = 0x12000, scoped, tag = 'internal scratch']
  %s0 = inlined_call_operand.vmem [shape: f32[40,32], index: 0, kind: input, shape index: {}]
  %s1 = inlined_call_operand.hbm [shape: f32[1,1], index: 1, kind: output, shape index: {}]
  %s2 = sld [smem:[#allocation0]]
  $region14: #{tpu_custom_call.1} parent=0
    _
  %s4 = ssub.s32 1, %s2
  %s5 = scalar_select 0, %s4, %s2
  $region1: #{tpu_custom_call.1} parent=0
    #allocation2 [shape = 'u8[512]{0}', space=smem, size = 0x200, scoped, tag = 'output window, operand 0, single buffered']
    #allocation3 [shape = 's32[1]{0}', space=sflag, size = 0x4, scoped, tag = 'scoped memory for tpu_custom_call.1']
    %6 = vsyncpa [#allocation3], 0
    // Predicated region
    $region2: #{tpu_custom_call.1} parent=1 // pred_check
      _
    $region3: #{tpu_custom_call.1} parent=1 // pred_check_branch
      %8 = sbr.rel (0) target = $region5
    $region4: #{tpu_custom_call.1} parent=1 // pred_region
      _
    $region5: #{tpu_custom_call.1} parent=1 // pred_fallthru
      _
    %v9 = vld [vmem:[%s0] sm:$0xff]
    %v10 = vld [vmem:[%s0 + $0x8] sm:$0xff]
    %v11 = vld [vmem:[%s0 + $0x10] sm:$0xff]
    %v12 = vld [vmem:[%s0 + $0x18] sm:$0xff]
    %v13 = vld [vmem:[%s0 + $0x20] sm:$0xff]
    %v14 = vlaneseq
    %v15 = vshrl.u32 %v14, 7
    %v16 = vadd.s32 %v15, 8
    %v17 = vadd.s32 %v15, 16
    %v18 = vadd.s32 %v15, 24
    %v19 = vadd.s32 %v15, 32
    %vm20 = vcmp.ge.s32.totalorder %v15, 8
    %vm21 = vcmp.ge.s32.totalorder %v16, 8
    %vm22 = vcmp.ge.s32.totalorder %v17, 8
    %vm23 = vcmp.ge.s32.totalorder %v18, 8
    %vm24 = vcmp.ge.s32.totalorder %v19, 8
    %v25 = vsel %vm20, 1, 0
    %v26 = vsel %vm21, 1, 0
    %v27 = vsel %vm22, 1, 0
    %v28 = vsel %vm23, 1, 0
    %v29 = vsel %vm24, 1, 0
    %vm30 = vcmp.ge.s32.totalorder %v15, 16
    %vm31 = vcmp.ge.s32.totalorder %v16, 16
    %vm32 = vcmp.ge.s32.totalorder %v17, 16
    %vm33 = vcmp.ge.s32.totalorder %v18, 16
    %vm34 = vcmp.ge.s32.totalorder %v19, 16
    %v35 = vsel %vm30, 1, 0
    %v36 = vsel %vm31, 1, 0
    %v37 = vsel %vm32, 1, 0
    %v38 = vsel %vm33, 1, 0
    %v39 = vsel %vm34, 1, 0
    %v40 = vadd.s32 %v25, %v35
    %v41 = vadd.s32 %v26, %v36
    %v42 = vadd.s32 %v27, %v37
    %v43 = vadd.s32 %v28, %v38
    %v44 = vadd.s32 %v29, %v39
    %vm45 = vcmp.ge.s32.totalorder %v15, 24
    %vm46 = vcmp.ge.s32.totalorder %v16, 24
    %vm47 = vcmp.ge.s32.totalorder %v17, 24
    %vm48 = vcmp.ge.s32.totalorder %v18, 24
    %vm49 = vcmp.ge.s32.totalorder %v19, 24
    %v50 = vsel %vm45, 1, 0
    %v51 = vsel %vm46, 1, 0
    %v52 = vsel %vm47, 1, 0
    %v53 = vsel %vm48, 1, 0
    %v54 = vsel %vm49, 1, 0
    %v55 = vadd.s32 %v40, %v50
    %v56 = vadd.s32 %v41, %v51
    %v57 = vadd.s32 %v42, %v52
    %v58 = vadd.s32 %v43, %v53
    %v59 = vadd.s32 %v44, %v54
    %vm60 = vcmp.ge.s32.totalorder %v15, 32
    %vm61 = vcmp.ge.s32.totalorder %v16, 32
    %vm62 = vcmp.ge.s32.totalorder %v17, 32
    %vm63 = vcmp.ge.s32.totalorder %v18, 32
    %vm64 = vcmp.ge.s32.totalorder %v19, 32
    %v65 = vsel %vm60, 1, 0
    %v66 = vsel %vm61, 1, 0
    %v67 = vsel %vm62, 1, 0
    %v68 = vsel %vm63, 1, 0
    %v69 = vsel %vm64, 1, 0
    %v70 = vadd.s32 %v55, %v65
    %v71 = vadd.s32 %v56, %v66
    %v72 = vadd.s32 %v57, %v67
    %v73 = vadd.s32 %v58, %v68
    %v74 = vadd.s32 %v59, %v69
    %v75 = vlaneseq
    %v76 = vand.u32 %v75, 127
    %vm77 = vcmp.ge.s32.totalorder %v76, 8
    %v78 = vsel %vm77, 1, 0
    %vm79 = vcmp.ge.s32.totalorder %v76, 16
    %v80 = vsel %vm79, 1, 0
    %v81 = vadd.s32 %v78, %v80
    %vm82 = vcmp.ge.s32.totalorder %v76, 24
    %v83 = vsel %vm82, 1, 0
    %v84 = vadd.s32 %v81, %v83
    %vm85 = vcmp.ge.s32.totalorder %v76, 32
    %v86 = vsel %vm85, 1, 0
    %v87 = vadd.s32 %v84, %v86
    %vm88 = vcmp.eq.s32.totalorder %v70, %v87
    %vm89 = vcmp.eq.s32.totalorder %v71, %v87
    %vm90 = vcmp.eq.s32.totalorder %v72, %v87
    %vm91 = vcmp.eq.s32.totalorder %v73, %v87
    %vm92 = vcmp.eq.s32.totalorder %v74, %v87
    %vm93 = vcmask 261120
    %v95 = vsel %vm93, %v9, 0
    %v98 = vsel %vm93, %v10, 0
    %v101 = vsel %vm93, %v11, 0
    %v104 = vsel %vm93, %v12, 0
    %v107 = vsel %vm93, %v13, 0
    %109 = vmatprep.subr.mxu0 0.0
    %110 = vmatpush1.xpose.msra.mxu0 0.0
    %111 = vmatprep.subr.mxu0 0.0
    %112 = vmatpush1.xpose.msra.mxu0 0.0
    %113 = vmatprep.subr.mxu0 0.0
    %114 = vmatpush1.xpose.msra.mxu0 0.0
    %115 = vmatprep.subr.mxu0 0.0
    %116 = vmatpush1.xpose.msra.mxu0 0.0
    %117 = vmatprep.subr.mxu0 0.0
    %118 = vmatpush1.xpose.msra.mxu0 0.0
    %119 = vmatprep.subr.mxu0 0.0
    %120 = vmatpush1.xpose.msra.mxu0 0.0
    %121 = vmatprep.subr.mxu0 0.0
    %122 = vmatpush1.xpose.msra.mxu0 0.0
    %123 = vmatprep.subr.mxu0 0.0
    %124 = vmatpush1.xpose.msra.mxu0 0.0
    %125 = vmatprep.subr.mxu0 0.0
    %126 = vmatpush1.xpose.msra.mxu0 0.0
    %127 = vmatprep.subr.mxu0 0.0
    %128 = vmatpush1.xpose.msra.mxu0 0.0
    %129 = vmatprep.subr.mxu0 0.0
    %130 = vmatpush1.xpose.msra.mxu0 0.0
    %131 = vmatprep.subr.mxu0 0.0
    %132 = vmatpush1.xpose.msra.mxu0 %v107
    %133 = vmatprep.subr.mxu0 0.0
    %134 = vmatpush1.xpose.msra.mxu0 %v104
    %135 = vmatprep.subr.mxu0 0.0
    %136 = vmatpush1.xpose.msra.mxu0 %v101
    %137 = vmatprep.subr.mxu0 0.0
    %138 = vmatpush1.xpose.msra.mxu0 %v98
    %139 = vmatprep.subr.mxu0 0.0
    %140 = vmatpush1.xpose.msra.mxu0 %v95
    %141 = vmatprep.subr.mxu0 0.0
    %142 = vmatpush2.xpose.msra.mxu0 0.0
    %143 = vmatprep.subr.mxu0 0.0
    %144 = vmatpush2.xpose.msra.mxu0 0.0
    %145 = vmatprep.subr.mxu0 0.0
    %146 = vmatpush2.xpose.msra.mxu0 0.0
    %147 = vmatprep.subr.mxu0 0.0
    %148 = vmatpush2.xpose.msra.mxu0 0.0
    %149 = vmatprep.subr.mxu0 0.0
    %150 = vmatpush2.xpose.msra.mxu0 0.0
    %151 = vmatprep.subr.mxu0 0.0
    %152 = vmatpush2.xpose.msra.mxu0 0.0
    %153 = vmatprep.subr.mxu0 0.0
    %154 = vmatpush2.xpose.msra.mxu0 0.0
    %155 = vmatprep.subr.mxu0 0.0
    %156 = vmatpush2.xpose.msra.mxu0 0.0
    %157 = vmatprep.subr.mxu0 0.0
    %158 = vmatpush2.xpose.msra.mxu0 0.0
    %159 = vmatprep.subr.mxu0 0.0
    %160 = vmatpush2.xpose.msra.mxu0 0.0
    %161 = vmatprep.subr.mxu0 0.0
    %162 = vmatpush2.xpose.msra.mxu0 0.0
    %163 = vmatprep.subr.mxu0 0.0
    %164 = vmatpush2.xpose.msra.mxu0 0.0
    %165 = vmatprep.subr.mxu0 0.0
    %166 = vmatpush2.xpose.msra.mxu0 0.0
    %167 = vmatprep.subr.mxu0 0.0
    %168 = vmatpush2.xpose.msra.mxu0 0.0
    %169 = vmatprep.subr.mxu0 0.0
    %170 = vmatpush2.xpose.msra.mxu0 0.0
    %171 = vmatprep.subr.mxu0 0.0
    %172 = vmatpush2.xpose.msra.mxu0 0.0
    %173 = vmatprep.mubr.f32.mxu0 0.0
    %174 = vmatmul.mubr.f32.gmra.mxu0 %v95
    %v175 = vpop.f32.mrf.mxu0
    %v176 = vadd.f32 0.0, %v175
    %v177 = vpop.f32.mrf.mxu0
    %178 = vmatprep.mubr.f32.mxu0 0.0
    %179 = vmatmul.mubr.f32.gmra.mxu0 %v98
    %v180 = vpop.f32.mrf.mxu0
    %v181 = vadd.f32 0.0, %v180
    %v182 = vpop.f32.mrf.mxu0
    %183 = vmatprep.mubr.f32.mxu0 0.0
    %184 = vmatmul.mubr.f32.gmra.mxu0 %v101
    %v185 = vpop.f32.mrf.mxu0
    %v186 = vadd.f32 0.0, %v185
    %v187 = vpop.f32.mrf.mxu0
    %188 = vmatprep.mubr.f32.mxu0 0.0
    %189 = vmatmul.mubr.f32.gmra.mxu0 %v104
    %v190 = vpop.f32.mrf.mxu0
    %v191 = vadd.f32 0.0, %v190
    %v192 = vpop.f32.mrf.mxu0
    %193 = vmatprep.mubr.f32.mxu0 0.0
    %194 = vmatmul.mubr.f32.gmra.mxu0 %v107
    %v195 = vpop.f32.mrf.mxu0
    %v196 = vadd.f32 0.0, %v195
    %v197 = vpop.f32.mrf.mxu0
    %198 = vdwg.mxu0
    %v199 = vmul.f32 %v9, %v9
    %v200 = vmul.f32 %v10, %v10
    %v201 = vmul.f32 %v11, %v11
    %v202 = vmul.f32 %v12, %v12
    %v203 = vmul.f32 %v13, %v13
    %v204 = vsel %vm93, %v199, 0.0
    %205 = vadd.xlane.f32.xlu0 %v204
    %v206 = vpop.xlane.xlu0 %205
    %v207 = vsel %vm93, %v200, 0.0
    %208 = vadd.xlane.f32.xlu0 %v207
    %v209 = vpop.xlane.xlu0 %208
    %v210 = vsel %vm93, %v201, 0.0
    %211 = vadd.xlane.f32.xlu0 %v210
    %v212 = vpop.xlane.xlu0 %211
    %v213 = vsel %vm93, %v202, 0.0
    %214 = vadd.xlane.f32.xlu0 %v213
    %v215 = vpop.xlane.xlu0 %214
    %v216 = vsel %vm93, %v203, 0.0
    %217 = vadd.xlane.f32.xlu0 %v216
    %v218 = vpop.xlane.xlu0 %217
    %v219 = vsel %vm88, %v206, 0.0
    %v220 = vsel %vm89, %v209, 0.0
    %v221 = vsel %vm90, %v212, 0.0
    %v222 = vsel %vm91, %v215, 0.0
    %v223 = vsel %vm92, %v218, 0.0
    %vm224 = vcmask 326656
    %v225 = vsel %vm224, %v219, 0.0
    %v226 = vsel %vm224, %v220, 0.0
    %v227 = vadd.f32 %v225, %v226
    %v228 = vsel %vm224, %v221, 0.0
    %v229 = vadd.f32 %v227, %v228
    %v230 = vsel %vm224, %v222, 0.0
    %v231 = vadd.f32 %v229, %v230
    %v232 = vsel %vm224, %v223, 0.0
    %v233 = vadd.f32 %v231, %v232
    %v234 = vrot.slane %v233, 4
    %v235 = vadd.f32 %v233, %v234
    %v236 = vrot.slane %v235, 2
    %v237 = vadd.f32 %v235, %v236
    %v238 = vrot.slane %v237, 1
    %v239 = vadd.f32 %v237, %v238
    %v240 = vrcp.pop %v239
    %v241 = vmul.f32 1.0, %v240
    %v242 = vmul.f32 %v176, %v241
    %v243 = vmul.f32 %v181, %v241
    %v244 = vmul.f32 %v186, %v241
    %v245 = vmul.f32 %v191, %v241
    %v246 = vmul.f32 %v196, %v241
    %v247 = vsel %vm88, %v242, -inf
    %v248 = vsel %vm89, %v243, -inf
    %v249 = vsel %vm90, %v244, -inf
    %v250 = vsel %vm91, %v245, -inf
    %v251 = vsel %vm92, %v246, -inf
    %v252 = vmul.f32 %v247, 1.442695
    %v253 = vpow.pop %v252
    %v254 = vmul.f32 %v248, 1.442695
    %v255 = vpow.pop %v254
    %v256 = vmul.f32 %v249, 1.442695
    %v257 = vpow.pop %v256
    %v258 = vmul.f32 %v250, 1.442695
    %v259 = vpow.pop %v258
    %v260 = vmul.f32 %v251, 1.442695
    %v261 = vpow.pop %v260
    %v262 = vsel %vm224, %v253, 0.0
    %v263 = vsel %vm224, %v255, 0.0
    %v264 = vadd.f32 %v262, %v263
    %v265 = vsel %vm224, %v257, 0.0
    %v266 = vadd.f32 %v264, %v265
    %v267 = vsel %vm224, %v259, 0.0
    %v268 = vadd.f32 %v266, %v267
    %v269 = vsel %vm224, %v261, 0.0
    %v270 = vadd.f32 %v268, %v269
    %271 = vadd.xlane.f32.xlu0 %v270
    %v272 = vpop.xlane.xlu0 %271
    %v273 = vrot.slane %v272, 4
    %v274 = vadd.f32 %v272, %v273
    %v275 = vrot.slane %v274, 2
    %v276 = vadd.f32 %v274, %v275
    %v277 = vrot.slane %v276, 1
    %v278 = vadd.f32 %v276, %v277
    %s279 = vtos %v278
    %vm280 = vcmp.eq.s32.totalorder %v15, %v87
    %v281 = vsel %vm280, 1, 0
    %v282 = vcvt.s32.f32 %v281
    %v284 = vsel %vm224, %v282, 0
    %286 = vmatprep.subr.mxu0 0.0
    %287 = vmatpush1.msra.mxu0 0.0
    %288 = vmatprep.subr.mxu0 0.0
    %289 = vmatpush1.msra.mxu0 0.0
    %290 = vmatprep.subr.mxu0 0.0
    %291 = vmatpush1.msra.mxu0 0.0
    %292 = vmatprep.subr.mxu0 0.0
    %293 = vmatpush1.msra.mxu0 0.0
    %294 = vmatprep.subr.mxu0 0.0
    %295 = vmatpush1.msra.mxu0 0.0
    %296 = vmatprep.subr.mxu0 0.0
    %297 = vmatpush1.msra.mxu0 0.0
    %298 = vmatprep.subr.mxu0 0.0
    %299 = vmatpush1.msra.mxu0 0.0
    %300 = vmatprep.subr.mxu0 0.0
    %301 = vmatpush1.msra.mxu0 0.0
    %302 = vmatprep.subr.mxu0 0.0
    %303 = vmatpush1.msra.mxu0 0.0
    %304 = vmatprep.subr.mxu0 0.0
    %305 = vmatpush1.msra.mxu0 0.0
    %306 = vmatprep.subr.mxu0 0.0
    %307 = vmatpush1.msra.mxu0 0.0
    %308 = vmatprep.subr.mxu0 0.0
    %309 = vmatpush1.msra.mxu0 %v196
    %310 = vmatprep.subr.mxu0 0.0
    %311 = vmatpush1.msra.mxu0 %v191
    %312 = vmatprep.subr.mxu0 0.0
    %313 = vmatpush1.msra.mxu0 %v186
    %314 = vmatprep.subr.mxu0 0.0
    %315 = vmatpush1.msra.mxu0 %v181
    %316 = vmatprep.subr.mxu0 0.0
    %317 = vmatpush1.msra.mxu0 %v176
    %318 = vmatprep.subr.mxu0 0.0
    %319 = vmatpush2.msra.mxu0 0.0
    %320 = vmatprep.subr.mxu0 0.0
    %321 = vmatpush2.msra.mxu0 0.0
    %322 = vmatprep.subr.mxu0 0.0
    %323 = vmatpush2.msra.mxu0 0.0
    %324 = vmatprep.subr.mxu0 0.0
    %325 = vmatpush2.msra.mxu0 0.0
    %326 = vmatprep.subr.mxu0 0.0
    %327 = vmatpush2.msra.mxu0 0.0
    %328 = vmatprep.subr.mxu0 0.0
    %329 = vmatpush2.msra.mxu0 0.0
    %330 = vmatprep.subr.mxu0 0.0
    %331 = vmatpush2.msra.mxu0 0.0
    %332 = vmatprep.subr.mxu0 0.0
    %333 = vmatpush2.msra.mxu0 0.0
    %334 = vmatprep.subr.mxu0 0.0
    %335 = vmatpush2.msra.mxu0 0.0
    %336 = vmatprep.subr.mxu0 0.0
    %337 = vmatpush2.msra.mxu0 0.0
    %338 = vmatprep.subr.mxu0 0.0
    %339 = vmatpush2.msra.mxu0 0.0
    %340 = vmatprep.subr.mxu0 0.0
    %341 = vmatpush2.msra.mxu0 0.0
    %342 = vmatprep.subr.mxu0 0.0
    %343 = vmatpush2.msra.mxu0 0.0
    %344 = vmatprep.subr.mxu0 0.0
    %345 = vmatpush2.msra.mxu0 0.0
    %346 = vmatprep.subr.mxu0 0.0
    %347 = vmatpush2.msra.mxu0 0.0
    %348 = vmatprep.subr.mxu0 0.0
    %349 = vmatpush2.msra.mxu0 0.0
    %350 = vmatprep.mubr.f32.mxu0 0.0
    %351 = vmatmul.mubr.f32.gmra.mxu0 %v284
    %v352 = vpop.f32.mrf.mxu0
    %v353 = vadd.f32 0.0, %v352
    %v354 = vpop.f32.mrf.mxu0
    %355 = vdwg.mxu0
    %v357 = vsel %vm224, %v353, 0
    %359 = vmatprep.subr.mxu0 0.0
    %360 = vmatpush1.xpose.msra.mxu0 0.0
    %361 = vmatprep.subr.mxu0 0.0
    %362 = vmatpush1.xpose.msra.mxu0 0.0
    %363 = vmatprep.subr.mxu0 0.0
    %364 = vmatpush1.xpose.msra.mxu0 0.0
    %365 = vmatprep.subr.mxu0 0.0
    %366 = vmatpush1.xpose.msra.mxu0 0.0
    %367 = vmatprep.subr.mxu0 0.0
    %368 = vmatpush1.xpose.msra.mxu0 0.0
    %369 = vmatprep.subr.mxu0 0.0
    %370 = vmatpush1.xpose.msra.mxu0 0.0
    %371 = vmatprep.subr.mxu0 0.0
    %372 = vmatpush1.xpose.msra.mxu0 0.0
    %373 = vmatprep.subr.mxu0 0.0
    %374 = vmatpush1.xpose.msra.mxu0 0.0
    %375 = vmatprep.subr.mxu0 0.0
    %376 = vmatpush1.xpose.msra.mxu0 0.0
    %377 = vmatprep.subr.mxu0 0.0
    %378 = vmatpush1.xpose.msra.mxu0 0.0
    %379 = vmatprep.subr.mxu0 0.0
    %380 = vmatpush1.xpose.msra.mxu0 0.0
    %381 = vmatprep.subr.mxu0 0.0
    %382 = vmatpush1.xpose.msra.mxu0 0.0
    %383 = vmatprep.subr.mxu0 0.0
    %384 = vmatpush1.xpose.msra.mxu0 0.0
    %385 = vmatprep.subr.mxu0 0.0
    %386 = vmatpush1.xpose.msra.mxu0 0.0
    %387 = vmatprep.subr.mxu0 0.0
    %388 = vmatpush1.xpose.msra.mxu0 0.0
    %389 = vmatprep.subr.mxu0 0.0
    %390 = vmatpush1.xpose.msra.mxu0 %v284
    %391 = vmatprep.subr.mxu0 0.0
    %392 = vmatpush2.xpose.msra.mxu0 0.0
    %393 = vmatprep.subr.mxu0 0.0
    %394 = vmatpush2.xpose.msra.mxu0 0.0
    %395 = vmatprep.subr.mxu0 0.0
    %396 = vmatpush2.xpose.msra.mxu0 0.0
    %397 = vmatprep.subr.mxu0 0.0
    %398 = vmatpush2.xpose.msra.mxu0 0.0
    %399 = vmatprep.subr.mxu0 0.0
    %400 = vmatpush2.xpose.msra.mxu0 0.0
    %401 = vmatprep.subr.mxu0 0.0
    %402 = vmatpush2.xpose.msra.mxu0 0.0
    %403 = vmatprep.subr.mxu0 0.0
    %404 = vmatpush2.xpose.msra.mxu0 0.0
    %405 = vmatprep.subr.mxu0 0.0
    %406 = vmatpush2.xpose.msra.mxu0 0.0
    %407 = vmatprep.subr.mxu0 0.0
    %408 = vmatpush2.xpose.msra.mxu0 0.0
    %409 = vmatprep.subr.mxu0 0.0
    %410 = vmatpush2.xpose.msra.mxu0 0.0
    %411 = vmatprep.subr.mxu0 0.0
    %412 = vmatpush2.xpose.msra.mxu0 0.0
    %413 = vmatprep.subr.mxu0 0.0
    %414 = vmatpush2.xpose.msra.mxu0 0.0
    %415 = vmatprep.subr.mxu0 0.0
    %416 = vmatpush2.xpose.msra.mxu0 0.0
    %417 = vmatprep.subr.mxu0 0.0
    %418 = vmatpush2.xpose.msra.mxu0 0.0
    %419 = vmatprep.subr.mxu0 0.0
    %420 = vmatpush2.xpose.msra.mxu0 0.0
    %421 = vmatprep.subr.mxu0 0.0
    %422 = vmatpush2.xpose.msra.mxu0 0.0
    %423 = vmatprep.mubr.f32.mxu0 0.0
    %424 = vmatmul.mubr.f32.gmra.mxu0 %v357
    %v425 = vpop.f32.mrf.mxu0
    %v426 = vadd.f32 0.0, %v425
    %v427 = vpop.f32.mrf.mxu0
    %428 = vdwg.mxu0
    %v429 = vmul.f32 %v426, 0.015625
    %vm430 = vcmp.eq.s32.totalorder %v15, %v76
    %v431 = vsel %vm430, %v429, 0.0
    %vm432 = vcmask 36864
    %v433 = vsel %vm432, %v431, 0.0
    %434 = vadd.xlane.f32.xlu0 %v433
    %v435 = vpop.xlane.xlu0 %434
    %v436 = vrot.slane %v435, 4
    %v437 = vadd.f32 %v435, %v436
    %v438 = vrot.slane %v437, 2
    %v439 = vadd.f32 %v437, %v438
    %v440 = vrot.slane %v439, 1
    %v441 = vadd.f32 %v439, %v440
    %s442 = vtos %v441
    %v443 = vstv %s442
    %v444 = vrcp.pop %v443
    %v445 = vmul.f32 %v429, %v444
    %v446 = vmul.f32 %v445, 1.442695
    %v447 = vpow.pop %v446
    %v448 = vsel %vm432, %v447, 0.0
    %449 = vadd.xlane.f32.xlu0 %v448
    %v450 = vpop.xlane.xlu0 %449
    %v451 = vrot.slane %v450, 4
    %v452 = vadd.f32 %v450, %v451
    %v453 = vrot.slane %v452, 2
    %v454 = vadd.f32 %v452, %v453
    %v455 = vrot.slane %v454, 1
    %v456 = vadd.f32 %v454, %v455
    %s457 = vtos %v456
    %s458 = sadd.f32 %s279, %s457
    %v459 = vstv %s458
    %v460 = vrcp.pop %v459
    %s461 = vtos %v460
    %s462 = smul.f32 %s279, %s461
    %v463 = vstv %s462
    %v464 = vlog2.pop %v463
    %v465 = vmul.f32 %v464, 0.6931472
    %s466 = vtos %v465
    %s467 = ssub.f32 0.0, %s466
    %s468 = scalar_lea.smem [#allocation2], 0
    %469 = sst [smem:[%s468]] %s467
    // Predicated region
    $region6: #{tpu_custom_call.1} parent=1 // pred_check
      _
    $region7: #{tpu_custom_call.1} parent=1 // pred_check_branch
      %471 = sbr.rel (0) target = $region9
    $region8: #{tpu_custom_call.1} parent=1 // pred_region
      %s473 = ssub.s32 16, 16
      %474 = vsyncadd [#allocation3], %s473
      %477 = dma.smem_to_hbm [#allocation2], 16, %s1, [#allocation3]
    $region9: #{tpu_custom_call.1} parent=1 // pred_fallthru
      _
    // Predicated region
    $region10: #{tpu_custom_call.1} parent=1 // pred_check
      _
    $region11: #{tpu_custom_call.1} parent=1 // pred_check_branch
      %479 = sbr.rel (0) target = $region13
    $region12: #{tpu_custom_call.1} parent=1 // pred_region
      %480 = dma.done [#allocation3], 16
    $region13: #{tpu_custom_call.1} parent=1 // pred_fallthru
      _
    %481 = sfence
    %482 = vsyncpa [#allocation3], 1

</llo_original>
